<compile_context>
chip_gen: v5e
topology: v5e:2x2
jax: 0.10.0
libtpu: 0.0.40
codegen_flags: <defaults>
</compile_context>

<pallas_src>
import jax
import jax.numpy as jnp
from jax.experimental import pallas as pl
from jax.experimental.pallas import tpu as pltpu


def _policy_kernel(x_ref, w1_ref, b1_ref, w2_ref, b2_ref, out_ref):
    # x_ref : [4, TB]     w1_ref: [128, 4]   b1_ref: [128, 1]
    # w2_ref: [2, 128]    b2_ref: [2, 1]     out_ref: [2, TB]
    x = x_ref[...]
    h = jnp.dot(w1_ref[...], x, preferred_element_type=jnp.float32)   # [128, TB]
    h = jnp.maximum(h + b1_ref[...], 0.0)
    s = jnp.dot(w2_ref[...], h, preferred_element_type=jnp.float32)   # [2, TB]
    s = s + b2_ref[...]
    # 2-class softmax:  p1 = sigmoid(s1 - s0),  p0 = sigmoid(s0 - s1)
    d = s[1:2, :] - s[0:1, :]                                         # [1, TB]
    p1 = jax.nn.sigmoid(d)
    p0 = jax.nn.sigmoid(-d)
    out_ref[0:1, :] = p0.astype(out_ref.dtype)
    out_ref[1:2, :] = p1.astype(out_ref.dtype)


def policy_forward(x, w1, b1, w2, b2, *, batch_tile=512):
    """x: [B, 4] f32; torch-layout params w1 [128,4], b1 [128], w2 [2,128], b2 [2].
    Returns softmax action probabilities [B, 2] f32."""
    B = x.shape[0]
    H, Fin = w1.shape          # 128, 4
    A = w2.shape[0]            # 2

    # Batch is the lane axis -> tile must be a multiple of 128.  Keep the tile
    # modest (<=512 by default) so the f32 hidden activation [128, TB] and the
    # double-buffered x/out tiles stay far inside v7x's 64 MiB VMEM as well.
    tb = min(batch_tile, max(128, pl.cdiv(B, 128) * 128))
    Bp = pl.cdiv(B, tb) * tb

    xt = x.T                                            # [4, B]
    if Bp != B:
        xt = jnp.pad(xt, ((0, 0), (0, Bp - B)))         # padded cols are harmless
    b1c = b1.reshape(H, 1)
    b2c = b2.reshape(A, 1)

    cost = pl.CostEstimate(
        flops=2 * B * (Fin * H + H * A),
        transcendentals=2 * B,
        bytes_accessed=B * (Fin + A) * 4 + (Fin * H + H + H * A + A) * 4,
    )

    out = pl.pallas_call(
        _policy_kernel,
        out_shape=jax.ShapeDtypeStruct((A, Bp), jnp.float32),
        grid_spec=pltpu.PrefetchScalarGridSpec(
            num_scalar_prefetch=0,
            grid=(Bp // tb,),
            in_specs=[
                pl.BlockSpec((Fin, tb), lambda i: (0, i)),   # x tile (per grid step)
                pl.BlockSpec((H, Fin), lambda i: (0, 0)),    # w1 (VMEM-resident)
                pl.BlockSpec((H, 1),   lambda i: (0, 0)),    # b1
                pl.BlockSpec((A, H),   lambda i: (0, 0)),    # w2
                pl.BlockSpec((A, 1),   lambda i: (0, 0)),    # b2
            ],
            out_specs=pl.BlockSpec((A, tb), lambda i: (0, i)),
        ),
        compiler_params=pltpu.CompilerParams(
            dimension_semantics=("parallel",)),
        cost_estimate=cost,
    )(xt, w1, b1c, w2, b2c)

    return out[:, :B].T                                  # back to [B, 2]


def init_params(key):
    """Deterministic init mimicking torch.nn.Linear (U(-1/sqrt(fan_in), +)),
    stored in torch layout: w [out_features, in_features], b [out_features]."""
    k1, k2, k3, k4 = jax.random.split(key, 4)
    bound1 = 1.0 / jnp.sqrt(4.0)
    bound2 = 1.0 / jnp.sqrt(128.0)
    w1 = jax.random.uniform(k1, (128, 4), jnp.float32, -bound1, bound1)
    b1 = jax.random.uniform(k2, (128,), jnp.float32, -bound1, bound1)
    w2 = jax.random.uniform(k3, (2, 128), jnp.float32, -bound2, bound2)
    b2 = jax.random.uniform(k4, (2,), jnp.float32, -bound2, bound2)
    return w1, b1, w2, b2


def reference_forward(x, w1, b1, w2, b2):
    h = jnp.maximum(x @ w1.T + b1, 0.0)
    s = h @ w2.T + b2
    return jax.nn.softmax(s, axis=-1)


if __name__ == "__main__":
    key = jax.random.PRNGKey(0)
    kx, kp = jax.random.split(key)

    B = 8                                   # small batch of 4-dim observations
    x = jax.random.normal(kx, (B, 4), jnp.float32)
    w1, b1, w2, b2 = init_params(kp)

    probs = policy_forward(x, w1, b1, w2, b2)
    probs = jax.block_until_ready(probs)

    ref = reference_forward(x, w1, b1, w2, b2)
    assert probs.shape == (B, 2)
    assert jnp.allclose(jnp.sum(probs, axis=-1), 1.0, atol=1e-5)
    assert jnp.allclose(probs, ref, atol=1e-5, rtol=1e-5)

    print("KERNEL_OK")
</pallas_src>

<mosaic_0001>
module attributes {stable_mosaic.version = 11 : i64} {
  func.func @_policy_kernel(%arg0: i32, %arg1: memref<4x128xf32, #tpu.memory_space<vmem>>, %arg2: memref<128x4xf32, #tpu.memory_space<vmem>>, %arg3: memref<128x1xf32, #tpu.memory_space<vmem>>, %arg4: memref<2x128xf32, #tpu.memory_space<vmem>>, %arg5: memref<2x1xf32, #tpu.memory_space<vmem>>, %arg6: memref<2x128xf32, #tpu.memory_space<vmem>>) attributes {dimension_semantics = [#tpu.dimension_semantics<parallel>], iteration_bounds = array<i64: 1>, scalar_prefetch = 0 : i64, scratch_operands = 0 : i64, tpu.core_type = #tpu.core_type<tc>, window_params = [{transform_indices = @transform_0, window_bounds = array<i64: 4, 128>}, {pipeline_mode = #tpu.pipeline_mode<synchronous>, transform_indices = @transform_1, window_bounds = array<i64: 128, 4>}, {pipeline_mode = #tpu.pipeline_mode<synchronous>, transform_indices = @transform_2, window_bounds = array<i64: 128, 1>}, {pipeline_mode = #tpu.pipeline_mode<synchronous>, transform_indices = @transform_3, window_bounds = array<i64: 2, 128>}, {pipeline_mode = #tpu.pipeline_mode<synchronous>, transform_indices = @transform_4, window_bounds = array<i64: 2, 1>}, {transform_indices = @transform_5, window_bounds = array<i64: 2, 128>}]} {
    %c0 = arith.constant 0 : index
    %c0_0 = arith.constant 0 : index
    %0 = vector.load %arg1[%c0, %c0_0] : memref<4x128xf32, #tpu.memory_space<vmem>>, vector<4x128xf32>
    %c0_1 = arith.constant 0 : index
    %c0_2 = arith.constant 0 : index
    %1 = vector.load %arg2[%c0_1, %c0_2] : memref<128x4xf32, #tpu.memory_space<vmem>>, vector<128x4xf32>
    %cst = arith.constant dense<0.000000e+00> : vector<128x128xf32>
    %2 = tpu.matmul %1, %0, %cst {dimension_numbers = #tpu.dot_dimension_numbers<[1], [0], [0], [1], [0, 0, 1, 1], [], []>} : vector<128x4xf32>, vector<4x128xf32>, vector<128x128xf32> -> vector<128x128xf32>
    %c0_3 = arith.constant 0 : index
    %c0_4 = arith.constant 0 : index
    %3 = vector.load %arg3[%c0_3, %c0_4] : memref<128x1xf32, #tpu.memory_space<vmem>>, vector<128x1xf32>
    %4 = vector.broadcast %3 : vector<128x1xf32> to vector<128x128xf32>
    %5 = arith.addf %2, %4 : vector<128x128xf32>
    %cst_5 = arith.constant 0.000000e+00 : f32
    %6 = vector.broadcast %cst_5 : f32 to vector<128x128xf32>
    %7 = arith.maximumf %5, %6 : vector<128x128xf32>
    %c0_6 = arith.constant 0 : index
    %c0_7 = arith.constant 0 : index
    %8 = vector.load %arg4[%c0_6, %c0_7] : memref<2x128xf32, #tpu.memory_space<vmem>>, vector<2x128xf32>
    %cst_8 = arith.constant dense<0.000000e+00> : vector<2x128xf32>
    %9 = tpu.matmul %8, %7, %cst_8 {dimension_numbers = #tpu.dot_dimension_numbers<[1], [0], [0], [1], [0, 0, 1, 1], [], []>} : vector<2x128xf32>, vector<128x128xf32>, vector<2x128xf32> -> vector<2x128xf32>
    %c0_9 = arith.constant 0 : index
    %c0_10 = arith.constant 0 : index
    %10 = vector.load %arg5[%c0_9, %c0_10] : memref<2x1xf32, #tpu.memory_space<vmem>>, vector<2x1xf32>
    %11 = vector.broadcast %10 : vector<2x1xf32> to vector<2x128xf32>
    %12 = arith.addf %9, %11 : vector<2x128xf32>
    %13 = vector.extract_strided_slice %12 {offsets = [1, 0], sizes = [1, 128], strides = [1, 1]} : vector<2x128xf32> to vector<1x128xf32>
    %14 = vector.extract_strided_slice %12 {offsets = [0, 0], sizes = [1, 128], strides = [1, 1]} : vector<2x128xf32> to vector<1x128xf32>
    %15 = arith.subf %13, %14 : vector<1x128xf32>
    %16 = arith.negf %15 : vector<1x128xf32>
    %17 = math.exp %16 : vector<1x128xf32>
    %cst_11 = arith.constant 1.000000e+00 : f32
    %18 = vector.broadcast %cst_11 : f32 to vector<1x128xf32>
    %19 = arith.addf %18, %17 : vector<1x128xf32>
    %20 = arith.divf %18, %19 : vector<1x128xf32>
    %cst_12 = arith.constant 0.000000e+00 : f32
    %21 = vector.broadcast %cst_12 : f32 to vector<1x128xf32>
    %22 = arith.subf %21, %15 : vector<1x128xf32>
    %23 = arith.negf %22 : vector<1x128xf32>
    %24 = math.exp %23 : vector<1x128xf32>
    %cst_13 = arith.constant 1.000000e+00 : f32
    %25 = vector.broadcast %cst_13 : f32 to vector<1x128xf32>
    %26 = arith.addf %25, %24 : vector<1x128xf32>
    %27 = arith.divf %25, %26 : vector<1x128xf32>
    %c0_14 = arith.constant 0 : index
    %c0_15 = arith.constant 0 : index
    %28 = vector.load %arg6[%c0_14, %c0_15] : memref<2x128xf32, #tpu.memory_space<vmem>>, vector<1x128xf32>
    tpu.vector_store %arg6[%c0_14, %c0_15], %27 {strides = array<i32>} : memref<2x128xf32, #tpu.memory_space<vmem>>, vector<1x128xf32>,
    %c1 = arith.constant 1 : index
    %c0_16 = arith.constant 0 : index
    %29 = vector.load %arg6[%c1, %c0_16] : memref<2x128xf32, #tpu.memory_space<vmem>>, vector<1x128xf32>
    tpu.vector_store %arg6[%c1, %c0_16], %20 {strides = array<i32>} : memref<2x128xf32, #tpu.memory_space<vmem>>, vector<1x128xf32>,
    return
  }
  func.func @transform_0(%arg0: i32) -> (i32, i32) {
    %c0_i32 = arith.constant 0 : i32
    %c0_i32_0 = arith.constant 0 : i32
    return %c0_i32, %arg0 : i32, i32
  }
  func.func @transform_1(%arg0: i32) -> (i32, i32) {
    %c0_i32 = arith.constant 0 : i32
    %c0_i32_0 = arith.constant 0 : i32
    %c0_i32_1 = arith.constant 0 : i32
    return %c0_i32, %c0_i32_0 : i32, i32
  }
  func.func @transform_2(%arg0: i32) -> (i32, i32) {
    %c0_i32 = arith.constant 0 : i32
    %c0_i32_0 = arith.constant 0 : i32
    %c0_i32_1 = arith.constant 0 : i32
    return %c0_i32, %c0_i32_0 : i32, i32
  }
  func.func @transform_3(%arg0: i32) -> (i32, i32) {
    %c0_i32 = arith.constant 0 : i32
    %c0_i32_0 = arith.constant 0 : i32
    %c0_i32_1 = arith.constant 0 : i32
    return %c0_i32, %c0_i32_0 : i32, i32
  }
  func.func @transform_4(%arg0: i32) -> (i32, i32) {
    %c0_i32 = arith.constant 0 : i32
    %c0_i32_0 = arith.constant 0 : i32
    %c0_i32_1 = arith.constant 0 : i32
    return %c0_i32, %c0_i32_0 : i32, i32
  }
  func.func @transform_5(%arg0: i32) -> (i32, i32) {
    %c0_i32 = arith.constant 0 : i32
    %c0_i32_0 = arith.constant 0 : i32
    return %c0_i32, %arg0 : i32, i32
  }
}

</mosaic_0001>

<llo_original>
// kernel: tpu_custom_call.1
$region0: #{tpu_custom_call.1}
  #allocation0 [shape = 'u32[]', space=smem, size = 0x4, offset = 0x4, fixed_abs, tag = 'smem constant byte address 0x4 - core index']
  #allocation1 [shape = 'u32[72,128]{1,0:T(1,128)}', space=vmem, size = 0x9000, scoped, tag = 'internal scratch']
  %s0 = inlined_call_operand.vmem [shape: f32[4,128], index: 0, kind: input, shape index: {}]
  %s1 = inlined_call_operand.vmem [shape: f32[128,4], index: 1, kind: input, shape index: {}]
  %s2 = inlined_call_operand.vmem [shape: f32[128,1], index: 2, kind: input, shape index: {}]
  %s3 = inlined_call_operand.vmem [shape: f32[2,128], index: 3, kind: input, shape index: {}]
  %s4 = inlined_call_operand.vmem [shape: f32[2,1], index: 4, kind: input, shape index: {}]
  %s5 = inlined_call_operand.hbm [shape: f32[2,128], index: 5, kind: output, shape index: {}]
  %s6 = sld [smem:[#allocation0]]
  $region30: #{tpu_custom_call.1} parent=0
    _
  %s8 = ssub.s32 1, %s6
  %s9 = scalar_select 0, %s8, %s6
  $region1: #{tpu_custom_call.1} parent=0
    #allocation2 [shape = 'u8[1024]{0}', space=vmem, size = 0x400, scoped, tag = 'output window, operand 0, single buffered']
    #allocation3 [shape = 's32[1]{0}', space=sflag, size = 0x4, scoped, tag = 'scoped memory for tpu_custom_call.1']
    %10 = vsyncpa [#allocation3], 0
    // Predicated region
    $region2: #{tpu_custom_call.1} parent=1 // pred_check
      _
    $region3: #{tpu_custom_call.1} parent=1 // pred_check_branch
      %12 = sbr.rel (0) target = $region5
    $region4: #{tpu_custom_call.1} parent=1 // pred_region
      _
    $region5: #{tpu_custom_call.1} parent=1 // pred_fallthru
      _
    // Predicated region
    $region6: #{tpu_custom_call.1} parent=1 // pred_check
      _
    $region7: #{tpu_custom_call.1} parent=1 // pred_check_branch
      %14 = sbr.rel (0) target = $region9
    $region8: #{tpu_custom_call.1} parent=1 // pred_region
      _
    $region9: #{tpu_custom_call.1} parent=1 // pred_fallthru
      _
    // Predicated region
    $region10: #{tpu_custom_call.1} parent=1 // pred_check
      _
    $region11: #{tpu_custom_call.1} parent=1 // pred_check_branch
      %16 = sbr.rel (0) target = $region13
    $region12: #{tpu_custom_call.1} parent=1 // pred_region
      _
    $region13: #{tpu_custom_call.1} parent=1 // pred_fallthru
      _
    // Predicated region
    $region14: #{tpu_custom_call.1} parent=1 // pred_check
      _
    $region15: #{tpu_custom_call.1} parent=1 // pred_check_branch
      %18 = sbr.rel (0) target = $region17
    $region16: #{tpu_custom_call.1} parent=1 // pred_region
      _
    $region17: #{tpu_custom_call.1} parent=1 // pred_fallthru
      _
    // Predicated region
    $region18: #{tpu_custom_call.1} parent=1 // pred_check
      _
    $region19: #{tpu_custom_call.1} parent=1 // pred_check_branch
      %20 = sbr.rel (0) target = $region21
    $region20: #{tpu_custom_call.1} parent=1 // pred_region
      _
    $region21: #{tpu_custom_call.1} parent=1 // pred_fallthru
      _
    %v21 = vld [vmem:[%s0] sm:$0xf]
    %v22 = vld [vmem:[%s1] sm:$0xff]
    %v23 = vld [vmem:[%s1 + $0x8] sm:$0xff]
    %v24 = vld [vmem:[%s1 + $0x10] sm:$0xff]
    %v25 = vld [vmem:[%s1 + $0x18] sm:$0xff]
    %v26 = vld [vmem:[%s1 + $0x20] sm:$0xff]
    %v27 = vld [vmem:[%s1 + $0x28] sm:$0xff]
    %v28 = vld [vmem:[%s1 + $0x30] sm:$0xff]
    %v29 = vld [vmem:[%s1 + $0x38] sm:$0xff]
    %v30 = vld [vmem:[%s1 + $0x40] sm:$0xff]
    %v31 = vld [vmem:[%s1 + $0x48] sm:$0xff]
    %v32 = vld [vmem:[%s1 + $0x50] sm:$0xff]
    %v33 = vld [vmem:[%s1 + $0x58] sm:$0xff]
    %v34 = vld [vmem:[%s1 + $0x60] sm:$0xff]
    %v35 = vld [vmem:[%s1 + $0x68] sm:$0xff]
    %v36 = vld [vmem:[%s1 + $0x70] sm:$0xff]
    %v37 = vld [vmem:[%s1 + $0x78] sm:$0xff]
    %v38 = vld [vmem:[%s2] sm:$0xff]
    %v39 = vld [vmem:[%s2 + $0x8] sm:$0xff]
    %v40 = vld [vmem:[%s2 + $0x10] sm:$0xff]
    %v41 = vld [vmem:[%s2 + $0x18] sm:$0xff]
    %v42 = vld [vmem:[%s2 + $0x20] sm:$0xff]
    %v43 = vld [vmem:[%s2 + $0x28] sm:$0xff]
    %v44 = vld [vmem:[%s2 + $0x30] sm:$0xff]
    %v45 = vld [vmem:[%s2 + $0x38] sm:$0xff]
    %v46 = vld [vmem:[%s2 + $0x40] sm:$0xff]
    %v47 = vld [vmem:[%s2 + $0x48] sm:$0xff]
    %v48 = vld [vmem:[%s2 + $0x50] sm:$0xff]
    %v49 = vld [vmem:[%s2 + $0x58] sm:$0xff]
    %v50 = vld [vmem:[%s2 + $0x60] sm:$0xff]
    %v51 = vld [vmem:[%s2 + $0x68] sm:$0xff]
    %v52 = vld [vmem:[%s2 + $0x70] sm:$0xff]
    %v53 = vld [vmem:[%s2 + $0x78] sm:$0xff]
    %55 = vset.pattern.permute.xlu0 0
    %56 = vperm.xlu0 %55, %v38
    %v57 = vpop.permute.xlu0 %56
    %60 = vset.pattern.permute.xlu0 0
    %61 = vperm.xlu0 %60, %v39
    %v62 = vpop.permute.xlu0 %61
    %65 = vset.pattern.permute.xlu0 0
    %66 = vperm.xlu0 %65, %v40
    %v67 = vpop.permute.xlu0 %66
    %70 = vset.pattern.permute.xlu0 0
    %71 = vperm.xlu0 %70, %v41
    %v72 = vpop.permute.xlu0 %71
    %75 = vset.pattern.permute.xlu0 0
    %76 = vperm.xlu0 %75, %v42
    %v77 = vpop.permute.xlu0 %76
    %80 = vset.pattern.permute.xlu0 0
    %81 = vperm.xlu0 %80, %v43
    %v82 = vpop.permute.xlu0 %81
    %85 = vset.pattern.permute.xlu0 0
    %86 = vperm.xlu0 %85, %v44
    %v87 = vpop.permute.xlu0 %86
    %90 = vset.pattern.permute.xlu0 0
    %91 = vperm.xlu0 %90, %v45
    %v92 = vpop.permute.xlu0 %91
    %95 = vset.pattern.permute.xlu0 0
    %96 = vperm.xlu0 %95, %v46
    %v97 = vpop.permute.xlu0 %96
    %100 = vset.pattern.permute.xlu0 0
    %101 = vperm.xlu0 %100, %v47
    %v102 = vpop.permute.xlu0 %101
    %105 = vset.pattern.permute.xlu0 0
    %106 = vperm.xlu0 %105, %v48
    %v107 = vpop.permute.xlu0 %106
    %110 = vset.pattern.permute.xlu0 0
    %111 = vperm.xlu0 %110, %v49
    %v112 = vpop.permute.xlu0 %111
    %115 = vset.pattern.permute.xlu0 0
    %116 = vperm.xlu0 %115, %v50
    %v117 = vpop.permute.xlu0 %116
    %120 = vset.pattern.permute.xlu0 0
    %121 = vperm.xlu0 %120, %v51
    %v122 = vpop.permute.xlu0 %121
    %125 = vset.pattern.permute.xlu0 0
    %126 = vperm.xlu0 %125, %v52
    %v127 = vpop.permute.xlu0 %126
    %130 = vset.pattern.permute.xlu0 0
    %131 = vperm.xlu0 %130, %v53
    %v132 = vpop.permute.xlu0 %131
    %vm134 = vcmask 31744
    %v136 = vsel %vm134, %v22, 0
    %v139 = vsel %vm134, %v23, 0
    %v142 = vsel %vm134, %v24, 0
    %v145 = vsel %vm134, %v25, 0
    %v148 = vsel %vm134, %v26, 0
    %v151 = vsel %vm134, %v27, 0
    %v154 = vsel %vm134, %v28, 0
    %v157 = vsel %vm134, %v29, 0
    %v160 = vsel %vm134, %v30, 0
    %v163 = vsel %vm134, %v31, 0
    %v166 = vsel %vm134, %v32, 0
    %v169 = vsel %vm134, %v33, 0
    %v172 = vsel %vm134, %v34, 0
    %v175 = vsel %vm134, %v35, 0
    %v178 = vsel %vm134, %v36, 0
    %v181 = vsel %vm134, %v37, 0
    %vm183 = vcmask 1043456
    %v185 = vsel %vm183, %v21, 0
    %187 = vmatpush.msra.mxu0 0.0
    %188 = vmatpush.msra.mxu0 0.0
    %189 = vmatpush.msra.mxu0 0.0
    %190 = vmatpush.msra.mxu0 0.0
    %191 = vmatpush.msra.mxu0 0.0
    %192 = vmatpush.msra.mxu0 0.0
    %193 = vmatpush.msra.mxu0 0.0
    %194 = vmatpush.msra.mxu0 0.0
    %195 = vmatpush.msra.mxu0 0.0
    %196 = vmatpush.msra.mxu0 0.0
    %197 = vmatpush.msra.mxu0 0.0
    %198 = vmatpush.msra.mxu0 0.0
    %199 = vmatpush.msra.mxu0 0.0
    %200 = vmatpush.msra.mxu0 0.0
    %201 = vmatpush.msra.mxu0 0.0
    %202 = vmatpush.msra.mxu0 %v185
    %203 = vmatmul.f32.gmra.mxu0 %v136
    %v204 = vpop.f32.mrf.mxu0
    %v205 = vadd.f32 %v57, %v204
    %206 = vmatmul.f32.gmra.mxu0 %v139
    %v207 = vpop.f32.mrf.mxu0
    %v208 = vadd.f32 %v62, %v207
    %209 = vmatmul.f32.gmra.mxu0 %v142
    %v210 = vpop.f32.mrf.mxu0
    %v211 = vadd.f32 %v67, %v210
    %212 = vmatmul.f32.gmra.mxu0 %v145
    %v213 = vpop.f32.mrf.mxu0
    %v214 = vadd.f32 %v72, %v213
    %215 = vmatmul.f32.gmra.mxu0 %v148
    %v216 = vpop.f32.mrf.mxu0
    %v217 = vadd.f32 %v77, %v216
    %218 = vmatmul.f32.gmra.mxu0 %v151
    %v219 = vpop.f32.mrf.mxu0
    %v220 = vadd.f32 %v82, %v219
    %221 = vmatmul.f32.gmra.mxu0 %v154
    %v222 = vpop.f32.mrf.mxu0
    %v223 = vadd.f32 %v87, %v222
    %224 = vmatmul.f32.gmra.mxu0 %v157
    %v225 = vpop.f32.mrf.mxu0
    %v226 = vadd.f32 %v92, %v225
    %227 = vmatmul.f32.gmra.mxu0 %v160
    %v228 = vpop.f32.mrf.mxu0
    %v229 = vadd.f32 %v97, %v228
    %230 = vmatmul.f32.gmra.mxu0 %v163
    %v231 = vpop.f32.mrf.mxu0
    %v232 = vadd.f32 %v102, %v231
    %233 = vmatmul.f32.gmra.mxu0 %v166
    %v234 = vpop.f32.mrf.mxu0
    %v235 = vadd.f32 %v107, %v234
    %236 = vmatmul.f32.gmra.mxu0 %v169
    %v237 = vpop.f32.mrf.mxu0
    %v238 = vadd.f32 %v112, %v237
    %239 = vmatmul.f32.gmra.mxu0 %v172
    %v240 = vpop.f32.mrf.mxu0
    %v241 = vadd.f32 %v117, %v240
    %242 = vmatmul.f32.gmra.mxu0 %v175
    %v243 = vpop.f32.mrf.mxu0
    %v244 = vadd.f32 %v122, %v243
    %245 = vmatmul.f32.gmra.mxu0 %v178
    %v246 = vpop.f32.mrf.mxu0
    %v247 = vadd.f32 %v127, %v246
    %248 = vmatmul.f32.gmra.mxu0 %v181
    %v249 = vpop.f32.mrf.mxu0
    %v250 = vadd.f32 %v132, %v249
    %251 = vdwg.mxu0
    %v252 = vmax.f32 %v205, 0.0
    %v253 = vmax.f32 %v208, 0.0
    %v254 = vmax.f32 %v211, 0.0
    %v255 = vmax.f32 %v214, 0.0
    %v256 = vmax.f32 %v217, 0.0
    %v257 = vmax.f32 %v220, 0.0
    %v258 = vmax.f32 %v223, 0.0
    %v259 = vmax.f32 %v226, 0.0
    %v260 = vmax.f32 %v229, 0.0
    %v261 = vmax.f32 %v232, 0.0
    %v262 = vmax.f32 %v235, 0.0
    %v263 = vmax.f32 %v238, 0.0
    %v264 = vmax.f32 %v241, 0.0
    %v265 = vmax.f32 %v244, 0.0
    %v266 = vmax.f32 %v247, 0.0
    %v267 = vmax.f32 %v250, 0.0
    %v268 = vld [vmem:[%s3] sm:$0x3]
    %v269 = vld [vmem:[%s4] sm:$0x3]
    %271 = vset.pattern.permute.xlu0 0
    %272 = vperm.xlu0 %271, %v269
    %v273 = vpop.permute.xlu0 %272
    %275 = vmatpush.msra.mxu0 %v267
    %276 = vmatpush.msra.mxu0 %v266
    %277 = vmatpush.msra.mxu0 %v265
    %278 = vmatpush.msra.mxu0 %v264
    %279 = vmatpush.msra.mxu0 %v263
    %280 = vmatpush.msra.mxu0 %v262
    %281 = vmatpush.msra.mxu0 %v261
    %282 = vmatpush.msra.mxu0 %v260
    %283 = vmatpush.msra.mxu0 %v259
    %284 = vmatpush.msra.mxu0 %v258
    %285 = vmatpush.msra.mxu0 %v257
    %286 = vmatpush.msra.mxu0 %v256
    %287 = vmatpush.msra.mxu0 %v255
    %288 = vmatpush.msra.mxu0 %v254
    %289 = vmatpush.msra.mxu0 %v253
    %290 = vmatpush.msra.mxu0 %v252
    %291 = vmatmul.f32.gmra.mxu0 %v268
    %v292 = vpop.f32.mrf.mxu0
    %v293 = vadd.f32 %v273, %v292
    %294 = vdwg.mxu0
    %v296 = vrot.slane %v293, 7
    %v298 = vsub.f32 %v293, %v296
    %v299 = vxor.u32 %v298, 2147483648
    %v300 = vmul.f32 %v299, 1.442695
    %v301 = vpow.pop %v300
    %v302 = vadd.f32 %v301, 1.0
    %v303 = vrcp.pop %v302
    %v304 = vmul.f32 %v302, %v303
    %v305 = vsub.f32 1.0, %v304
    %v306 = vmul.f32 %v303, %v305
    %v307 = vadd.f32 %v303, %v306
    %vm308 = vweird.f32 %v302
    %vm309 = vweird.f32 %v303
    %vm310 = vmor %vm308, %vm309
    %v311 = vsel %vm310, %v303, %v307
    %v312 = vand.u32 2147483647, %v302
    %vm313 = vcmp.eq.f32.partialorder %v312, 8.507059e+37
    %v314 = vand.u32 %v302, 2147483648
    %v315 = vor.u32 1.1754944e-38, %v314
    %v316 = vsel %vm313, %v315, %v311
    %v317 = vmul.f32 1.0, %v316
    %v318 = vsub.f32 0.0, %v298
    %v319 = vxor.u32 %v318, 2147483648
    %v320 = vmul.f32 %v319, 1.442695
    %v321 = vpow.pop %v320
    %v322 = vadd.f32 %v321, 1.0
    %v323 = vrcp.pop %v322
    %v324 = vmul.f32 %v322, %v323
    %v325 = vsub.f32 1.0, %v324
    %v326 = vmul.f32 %v323, %v325
    %v327 = vadd.f32 %v323, %v326
    %vm328 = vweird.f32 %v322
    %vm329 = vweird.f32 %v323
    %vm330 = vmor %vm328, %vm329
    %v331 = vsel %vm330, %v323, %v327
    %v332 = vand.u32 2147483647, %v322
    %vm333 = vcmp.eq.f32.partialorder %v332, 8.507059e+37
    %v334 = vand.u32 %v322, 2147483648
    %v335 = vor.u32 1.1754944e-38, %v334
    %v336 = vsel %vm333, %v335, %v331
    %v337 = vmul.f32 1.0, %v336
    %338 = vst [vmem:[#allocation2 - $0x1] sm:$0x2] %v337
    %339 = vst [vmem:[#allocation2] sm:$0x2] %v317
    // Predicated region
    $region22: #{tpu_custom_call.1} parent=1 // pred_check
      _
    $region23: #{tpu_custom_call.1} parent=1 // pred_check_branch
      %341 = sbr.rel (0) target = $region25
    $region24: #{tpu_custom_call.1} parent=1 // pred_region
      %343 = vsyncadd [#allocation3], 0
      %s345 = sshll.u32 [#allocation2], 4
      %s346 = int_to_ptr.vmem [resolvable:$true] %s345
      %s347 = sshll.u32 %s5, 4
      %s348 = int_to_ptr.hbm [resolvable:$true] %s347
      %350 = dma.vmem_to_hbm [thread:$0]  %s346, 32, %s348, [#allocation3]
    $region25: #{tpu_custom_call.1} parent=1 // pred_fallthru
      _
    // Predicated region
    $region26: #{tpu_custom_call.1} parent=1 // pred_check
      _
    $region27: #{tpu_custom_call.1} parent=1 // pred_check_branch
      %352 = sbr.rel (0) target = $region29
    $region28: #{tpu_custom_call.1} parent=1 // pred_region
      %354 = dma.done [#allocation3], 32
    $region29: #{tpu_custom_call.1} parent=1 // pred_fallthru
      _
    %355 = vsyncpa [#allocation3], 1

</llo_original>
